<compile_context>
chip_gen: v7x
topology: tpu7x:2x2x1
jax: 0.10.0
libtpu: 0.0.40
codegen_flags: <defaults>
</compile_context>

<pallas_src>
import math

import jax
import jax.numpy as jnp
from jax.experimental import pallas as pl
from jax.experimental.pallas import tpu as pltpu


def encoder_kernel(x_ref, mask_ref, w_enc_ref, b_enc_ref, w_dec_ref, b_dec_ref, o_ref):
    B, P, L = x_ref.shape
    NL = w_enc_ref.shape[0]
    BP = B * P
    scale = 1.0 / math.sqrt(L)

    # Flat row view of the activations; (B,P,L)->(B*P,L) is a leading-dim
    # merge (P == 8 == sublane tile) -> layout no-op.
    xf = x_ref[...].reshape(BP, L).astype(jnp.float32)
    mask = mask_ref[...]                              # (BP, BP) additive block-diag mask

    # Small static layer count -> trace-time unrolled loop (full LLO scheduler
    # visibility, static weight indexing).
    for l in range(NL):
        w_e = w_enc_ref[l]                            # (L, H)
        b_e = b_enc_ref[l]                            # (1, H)
        w_d = w_dec_ref[l]                            # (H, L)
        b_d = b_dec_ref[l]                            # (1, L)

        # fc_enc (Dropout is identity in eval mode).
        x_new = jnp.dot(xf, w_e, preferred_element_type=jnp.float32) + b_e   # (BP, H)

        # Flattened attention: one (BP,BP) matmul + block-diagonal mask.
        scores = jnp.dot(xf, xf.T, preferred_element_type=jnp.float32) * scale + mask
        m = jnp.max(scores, axis=-1, keepdims=True)
        e = jnp.exp(scores - m)
        denom = jnp.sum(e, axis=-1, keepdims=True)
        r = pl.reciprocal(denom, approx=True)         # EUP slot (free-ish)
        r = r * (2.0 - denom * r)                     # one Newton step -> f32 accuracy
        attn = e * r
        ctx = jnp.dot(attn, x_new, preferred_element_type=jnp.float32)       # (BP, H)

        # fc_dec
        dec = jnp.dot(ctx, w_d, preferred_element_type=jnp.float32) + b_d    # (BP, L)

        # LeakyReLU(0.2) + residual.
        xf = jnp.where(dec >= 0, dec, 0.2 * dec) + xf

    o_ref[...] = xf.reshape(B, P, L).astype(o_ref.dtype)


def encoder_forward(x, w_enc, b_enc, w_dec, b_dec):
    """x: (B, P, L); stacked weights: (NL, L, H), (NL, 1, H), (NL, H, L), (NL, 1, L)."""
    B, P, L = x.shape

    # Constant block-diagonal additive mask: 0 within a batch, -1e30 across
    # batches (finite, so softmax rows stay well-defined: no inf-inf -> NaN).
    batch_id = jnp.repeat(jnp.arange(B), P)
    mask = jnp.where(batch_id[:, None] == batch_id[None, :],
                     jnp.float32(0.0), jnp.float32(-1e30))

    vmem = pltpu.MemorySpace.VMEM
    out = pl.pallas_call(
        encoder_kernel,
        out_shape=jax.ShapeDtypeStruct((B, P, L), x.dtype),
        in_specs=[pl.BlockSpec(memory_space=vmem) for _ in range(6)],
        out_specs=pl.BlockSpec(memory_space=vmem),
    )(x, mask, w_enc, b_enc, w_dec, b_dec)
    return out


def encoder_reference(x, w_enc, b_enc, w_dec, b_dec):
    # Pure-JAX reference for correctness checking.
    x = x.astype(jnp.float32)
    NL = w_enc.shape[0]
    for l in range(NL):
        x_new = jnp.einsum('bpl,lh->bph', x, w_enc[l]) + b_enc[l]
        scores = jnp.einsum('bpl,bql->bpq', x, x) / math.sqrt(x.shape[-1])
        attn = jax.nn.softmax(scores, axis=-1)
        ctx = jnp.einsum('bpq,bqh->bph', attn, x_new)
        dec = jnp.einsum('bph,hl->bpl', ctx, w_dec[l]) + b_dec[l]
        x = jnp.where(dec >= 0, dec, 0.2 * dec) + x
    return x


if __name__ == "__main__":
    # Small shapes consistent with the module: batch=2, num_patch=8,
    # patch_len=16, hidden_dim=32, layer_num=3.
    B, P, L, H, NL = 2, 8, 16, 32, 3

    key = jax.random.PRNGKey(0)
    keys = jax.random.split(key, 1 + 4 * NL)

    x = jax.random.normal(keys[0], (B, P, L), dtype=jnp.float32)

    # PyTorch-style uniform(-1/sqrt(fan_in), 1/sqrt(fan_in)) init; weights are
    # stored already transposed to (in, out) and stacked along a layer axis.
    be = 1.0 / math.sqrt(L)
    bd = 1.0 / math.sqrt(H)
    w_enc = jnp.stack([jax.random.uniform(keys[1 + 4 * l + 0], (L, H), jnp.float32, -be, be)
                       for l in range(NL)])
    b_enc = jnp.stack([jax.random.uniform(keys[1 + 4 * l + 1], (1, H), jnp.float32, -be, be)
                       for l in range(NL)])
    w_dec = jnp.stack([jax.random.uniform(keys[1 + 4 * l + 2], (H, L), jnp.float32, -bd, bd)
                       for l in range(NL)])
    b_dec = jnp.stack([jax.random.uniform(keys[1 + 4 * l + 3], (1, L), jnp.float32, -bd, bd)
                       for l in range(NL)])

    out = encoder_forward(x, w_enc, b_enc, w_dec, b_dec)
    out = jax.block_until_ready(out)

    ref = encoder_reference(x, w_enc, b_enc, w_dec, b_dec)
    assert out.shape == (B, P, L)
    assert jnp.allclose(out, ref, atol=5e-4, rtol=5e-4), "mismatch vs JAX reference"

    print("KERNEL_OK")
</pallas_src>

<mosaic_0001>
module attributes {stable_mosaic.version = 11 : i64} {
  func.func @encoder_kernel(%arg0: memref<2x8x16xf32, #tpu.memory_space<vmem>>, %arg1: memref<16x16xf32, #tpu.memory_space<vmem>>, %arg2: memref<3x16x32xf32, #tpu.memory_space<vmem>>, %arg3: memref<3x1x32xf32, #tpu.memory_space<vmem>>, %arg4: memref<3x32x16xf32, #tpu.memory_space<vmem>>, %arg5: memref<3x1x16xf32, #tpu.memory_space<vmem>>, %arg6: memref<2x8x16xf32, #tpu.memory_space<vmem>>) attributes {dimension_semantics = [], scalar_prefetch = 0 : i64, scratch_operands = 0 : i64, tpu.core_type = #tpu.core_type<tc>} {
    %c0 = arith.constant 0 : index
    %c0_0 = arith.constant 0 : index
    %c0_1 = arith.constant 0 : index
    %0 = vector.load %arg0[%c0, %c0_0, %c0_1] : memref<2x8x16xf32, #tpu.memory_space<vmem>>, vector<2x8x16xf32>
    %1 = vector.shape_cast %0 : vector<2x8x16xf32> to vector<16x16xf32>
    %c0_2 = arith.constant 0 : index
    %c0_3 = arith.constant 0 : index
    %2 = vector.load %arg1[%c0_2, %c0_3] : memref<16x16xf32, #tpu.memory_space<vmem>>, vector<16x16xf32>
    %c0_4 = arith.constant 0 : index
    %c0_5 = arith.constant 0 : index
    %c0_6 = arith.constant 0 : index
    %3 = vector.load %arg2[%c0_4, %c0_5, %c0_6] : memref<3x16x32xf32, #tpu.memory_space<vmem>>, vector<1x16x32xf32>
    %4 = vector.shape_cast %3 : vector<1x16x32xf32> to vector<16x32xf32>
    %c0_7 = arith.constant 0 : index
    %c0_8 = arith.constant 0 : index
    %c0_9 = arith.constant 0 : index
    %5 = vector.load %arg3[%c0_7, %c0_8, %c0_9] : memref<3x1x32xf32, #tpu.memory_space<vmem>>, vector<1x1x32xf32>
    %6 = vector.shape_cast %5 : vector<1x1x32xf32> to vector<1x32xf32>
    %c0_10 = arith.constant 0 : index
    %c0_11 = arith.constant 0 : index
    %c0_12 = arith.constant 0 : index
    %7 = vector.load %arg4[%c0_10, %c0_11, %c0_12] : memref<3x32x16xf32, #tpu.memory_space<vmem>>, vector<1x32x16xf32>
    %8 = vector.shape_cast %7 : vector<1x32x16xf32> to vector<32x16xf32>
    %c0_13 = arith.constant 0 : index
    %c0_14 = arith.constant 0 : index
    %c0_15 = arith.constant 0 : index
    %9 = vector.load %arg5[%c0_13, %c0_14, %c0_15] : memref<3x1x16xf32, #tpu.memory_space<vmem>>, vector<1x1x16xf32>
    %10 = vector.shape_cast %9 : vector<1x1x16xf32> to vector<1x16xf32>
    %cst = arith.constant dense<0.000000e+00> : vector<16x32xf32>
    %11 = tpu.matmul %1, %4, %cst {dimension_numbers = #tpu.dot_dimension_numbers<[1], [0], [0], [1], [0, 0, 1, 1], [], []>} : vector<16x16xf32>, vector<16x32xf32>, vector<16x32xf32> -> vector<16x32xf32>
    %12 = vector.broadcast %6 : vector<1x32xf32> to vector<16x32xf32>
    %13 = arith.addf %11, %12 : vector<16x32xf32>
    %14 = tpu.transpose %1, [1, 0] : vector<16x16xf32> -> vector<16x16xf32>
    %cst_16 = arith.constant dense<0.000000e+00> : vector<16x16xf32>
    %15 = tpu.matmul %1, %14, %cst_16 {dimension_numbers = #tpu.dot_dimension_numbers<[1], [0], [0], [1], [0, 0, 1, 1], [], []>} : vector<16x16xf32>, vector<16x16xf32>, vector<16x16xf32> -> vector<16x16xf32>
    %cst_17 = arith.constant 2.500000e-01 : f32
    %16 = vector.broadcast %cst_17 : f32 to vector<16x16xf32>
    %17 = arith.mulf %15, %16 : vector<16x16xf32>
    %18 = arith.addf %17, %2 : vector<16x16xf32>
    %cst_18 = arith.constant dense<0xFF800000> : vector<16xf32>
    %19 = vector.multi_reduction <maximumf>, %18, %cst_18 [1] : vector<16x16xf32> to vector<16xf32>
    %20 = vector.shape_cast %19 : vector<16xf32> to vector<16x1xf32>
    %21 = vector.broadcast %20 : vector<16x1xf32> to vector<16x16xf32>
    %22 = arith.subf %18, %21 : vector<16x16xf32>
    %23 = math.exp %22 : vector<16x16xf32>
    %cst_19 = arith.constant dense<0.000000e+00> : vector<16xf32>
    %24 = vector.multi_reduction <add>, %23, %cst_19 [1] : vector<16x16xf32> to vector<16xf32>
    %25 = vector.shape_cast %24 : vector<16xf32> to vector<16x1xf32>
    %26 = tpu.reciprocal %25 {approx = true} : vector<16x1xf32> -> vector<16x1xf32>
    %27 = arith.mulf %25, %26 : vector<16x1xf32>
    %cst_20 = arith.constant 2.000000e+00 : f32
    %28 = vector.broadcast %cst_20 : f32 to vector<16x1xf32>
    %29 = arith.subf %28, %27 : vector<16x1xf32>
    %30 = arith.mulf %26, %29 : vector<16x1xf32>
    %31 = vector.broadcast %30 : vector<16x1xf32> to vector<16x16xf32>
    %32 = arith.mulf %23, %31 : vector<16x16xf32>
    %cst_21 = arith.constant dense<0.000000e+00> : vector<16x32xf32>
    %33 = tpu.matmul %32, %13, %cst_21 {dimension_numbers = #tpu.dot_dimension_numbers<[1], [0], [0], [1], [0, 0, 1, 1], [], []>} : vector<16x16xf32>, vector<16x32xf32>, vector<16x32xf32> -> vector<16x32xf32>
    %cst_22 = arith.constant dense<0.000000e+00> : vector<16x16xf32>
    %34 = tpu.matmul %33, %8, %cst_22 {dimension_numbers = #tpu.dot_dimension_numbers<[1], [0], [0], [1], [0, 0, 1, 1], [], []>} : vector<16x32xf32>, vector<32x16xf32>, vector<16x16xf32> -> vector<16x16xf32>
    %35 = vector.broadcast %10 : vector<1x16xf32> to vector<16x16xf32>
    %36 = arith.addf %34, %35 : vector<16x16xf32>
    %cst_23 = arith.constant 0.000000e+00 : f32
    %37 = vector.broadcast %cst_23 : f32 to vector<16x16xf32>
    %38 = arith.cmpf oge, %36, %37 : vector<16x16xf32>
    %cst_24 = arith.constant 2.000000e-01 : f32
    %39 = vector.broadcast %cst_24 : f32 to vector<16x16xf32>
    %40 = arith.mulf %39, %36 : vector<16x16xf32>
    %41 = arith.select %38, %36, %40 : vector<16x16xi1>, vector<16x16xf32>
    %42 = arith.addf %41, %1 : vector<16x16xf32>
    %c1 = arith.constant 1 : index
    %c0_25 = arith.constant 0 : index
    %c0_26 = arith.constant 0 : index
    %43 = vector.load %arg2[%c1, %c0_25, %c0_26] : memref<3x16x32xf32, #tpu.memory_space<vmem>>, vector<1x16x32xf32>
    %44 = vector.shape_cast %43 : vector<1x16x32xf32> to vector<16x32xf32>
    %c1_27 = arith.constant 1 : index
    %c0_28 = arith.constant 0 : index
    %c0_29 = arith.constant 0 : index
    %45 = vector.load %arg3[%c1_27, %c0_28, %c0_29] : memref<3x1x32xf32, #tpu.memory_space<vmem>>, vector<1x1x32xf32>
    %46 = vector.shape_cast %45 : vector<1x1x32xf32> to vector<1x32xf32>
    %c1_30 = arith.constant 1 : index
    %c0_31 = arith.constant 0 : index
    %c0_32 = arith.constant 0 : index
    %47 = vector.load %arg4[%c1_30, %c0_31, %c0_32] : memref<3x32x16xf32, #tpu.memory_space<vmem>>, vector<1x32x16xf32>
    %48 = vector.shape_cast %47 : vector<1x32x16xf32> to vector<32x16xf32>
    %c1_33 = arith.constant 1 : index
    %c0_34 = arith.constant 0 : index
    %c0_35 = arith.constant 0 : index
    %49 = vector.load %arg5[%c1_33, %c0_34, %c0_35] : memref<3x1x16xf32, #tpu.memory_space<vmem>>, vector<1x1x16xf32>
    %50 = vector.shape_cast %49 : vector<1x1x16xf32> to vector<1x16xf32>
    %cst_36 = arith.constant dense<0.000000e+00> : vector<16x32xf32>
    %51 = tpu.matmul %42, %44, %cst_36 {dimension_numbers = #tpu.dot_dimension_numbers<[1], [0], [0], [1], [0, 0, 1, 1], [], []>} : vector<16x16xf32>, vector<16x32xf32>, vector<16x32xf32> -> vector<16x32xf32>
    %52 = vector.broadcast %46 : vector<1x32xf32> to vector<16x32xf32>
    %53 = arith.addf %51, %52 : vector<16x32xf32>
    %54 = tpu.transpose %42, [1, 0] : vector<16x16xf32> -> vector<16x16xf32>
    %cst_37 = arith.constant dense<0.000000e+00> : vector<16x16xf32>
    %55 = tpu.matmul %42, %54, %cst_37 {dimension_numbers = #tpu.dot_dimension_numbers<[1], [0], [0], [1], [0, 0, 1, 1], [], []>} : vector<16x16xf32>, vector<16x16xf32>, vector<16x16xf32> -> vector<16x16xf32>
    %cst_38 = arith.constant 2.500000e-01 : f32
    %56 = vector.broadcast %cst_38 : f32 to vector<16x16xf32>
    %57 = arith.mulf %55, %56 : vector<16x16xf32>
    %58 = arith.addf %57, %2 : vector<16x16xf32>
    %cst_39 = arith.constant dense<0xFF800000> : vector<16xf32>
    %59 = vector.multi_reduction <maximumf>, %58, %cst_39 [1] : vector<16x16xf32> to vector<16xf32>
    %60 = vector.shape_cast %59 : vector<16xf32> to vector<16x1xf32>
    %61 = vector.broadcast %60 : vector<16x1xf32> to vector<16x16xf32>
    %62 = arith.subf %58, %61 : vector<16x16xf32>
    %63 = math.exp %62 : vector<16x16xf32>
    %cst_40 = arith.constant dense<0.000000e+00> : vector<16xf32>
    %64 = vector.multi_reduction <add>, %63, %cst_40 [1] : vector<16x16xf32> to vector<16xf32>
    %65 = vector.shape_cast %64 : vector<16xf32> to vector<16x1xf32>
    %66 = tpu.reciprocal %65 {approx = true} : vector<16x1xf32> -> vector<16x1xf32>
    %67 = arith.mulf %65, %66 : vector<16x1xf32>
    %cst_41 = arith.constant 2.000000e+00 : f32
    %68 = vector.broadcast %cst_41 : f32 to vector<16x1xf32>
    %69 = arith.subf %68, %67 : vector<16x1xf32>
    %70 = arith.mulf %66, %69 : vector<16x1xf32>
    %71 = vector.broadcast %70 : vector<16x1xf32> to vector<16x16xf32>
    %72 = arith.mulf %63, %71 : vector<16x16xf32>
    %cst_42 = arith.constant dense<0.000000e+00> : vector<16x32xf32>
    %73 = tpu.matmul %72, %53, %cst_42 {dimension_numbers = #tpu.dot_dimension_numbers<[1], [0], [0], [1], [0, 0, 1, 1], [], []>} : vector<16x16xf32>, vector<16x32xf32>, vector<16x32xf32> -> vector<16x32xf32>
    %cst_43 = arith.constant dense<0.000000e+00> : vector<16x16xf32>
    %74 = tpu.matmul %73, %48, %cst_43 {dimension_numbers = #tpu.dot_dimension_numbers<[1], [0], [0], [1], [0, 0, 1, 1], [], []>} : vector<16x32xf32>, vector<32x16xf32>, vector<16x16xf32> -> vector<16x16xf32>
    %75 = vector.broadcast %50 : vector<1x16xf32> to vector<16x16xf32>
    %76 = arith.addf %74, %75 : vector<16x16xf32>
    %cst_44 = arith.constant 0.000000e+00 : f32
    %77 = vector.broadcast %cst_44 : f32 to vector<16x16xf32>
    %78 = arith.cmpf oge, %76, %77 : vector<16x16xf32>
    %cst_45 = arith.constant 2.000000e-01 : f32
    %79 = vector.broadcast %cst_45 : f32 to vector<16x16xf32>
    %80 = arith.mulf %79, %76 : vector<16x16xf32>
    %81 = arith.select %78, %76, %80 : vector<16x16xi1>, vector<16x16xf32>
    %82 = arith.addf %81, %42 : vector<16x16xf32>
    %c2 = arith.constant 2 : index
    %c0_46 = arith.constant 0 : index
    %c0_47 = arith.constant 0 : index
    %83 = vector.load %arg2[%c2, %c0_46, %c0_47] : memref<3x16x32xf32, #tpu.memory_space<vmem>>, vector<1x16x32xf32>
    %84 = vector.shape_cast %83 : vector<1x16x32xf32> to vector<16x32xf32>
    %c2_48 = arith.constant 2 : index
    %c0_49 = arith.constant 0 : index
    %c0_50 = arith.constant 0 : index
    %85 = vector.load %arg3[%c2_48, %c0_49, %c0_50] : memref<3x1x32xf32, #tpu.memory_space<vmem>>, vector<1x1x32xf32>
    %86 = vector.shape_cast %85 : vector<1x1x32xf32> to vector<1x32xf32>
    %c2_51 = arith.constant 2 : index
    %c0_52 = arith.constant 0 : index
    %c0_53 = arith.constant 0 : index
    %87 = vector.load %arg4[%c2_51, %c0_52, %c0_53] : memref<3x32x16xf32, #tpu.memory_space<vmem>>, vector<1x32x16xf32>
    %88 = vector.shape_cast %87 : vector<1x32x16xf32> to vector<32x16xf32>
    %c2_54 = arith.constant 2 : index
    %c0_55 = arith.constant 0 : index
    %c0_56 = arith.constant 0 : index
    %89 = vector.load %arg5[%c2_54, %c0_55, %c0_56] : memref<3x1x16xf32, #tpu.memory_space<vmem>>, vector<1x1x16xf32>
    %90 = vector.shape_cast %89 : vector<1x1x16xf32> to vector<1x16xf32>
    %cst_57 = arith.constant dense<0.000000e+00> : vector<16x32xf32>
    %91 = tpu.matmul %82, %84, %cst_57 {dimension_numbers = #tpu.dot_dimension_numbers<[1], [0], [0], [1], [0, 0, 1, 1], [], []>} : vector<16x16xf32>, vector<16x32xf32>, vector<16x32xf32> -> vector<16x32xf32>
    %92 = vector.broadcast %86 : vector<1x32xf32> to vector<16x32xf32>
    %93 = arith.addf %91, %92 : vector<16x32xf32>
    %94 = tpu.transpose %82, [1, 0] : vector<16x16xf32> -> vector<16x16xf32>
    %cst_58 = arith.constant dense<0.000000e+00> : vector<16x16xf32>
    %95 = tpu.matmul %82, %94, %cst_58 {dimension_numbers = #tpu.dot_dimension_numbers<[1], [0], [0], [1], [0, 0, 1, 1], [], []>} : vector<16x16xf32>, vector<16x16xf32>, vector<16x16xf32> -> vector<16x16xf32>
    %cst_59 = arith.constant 2.500000e-01 : f32
    %96 = vector.broadcast %cst_59 : f32 to vector<16x16xf32>
    %97 = arith.mulf %95, %96 : vector<16x16xf32>
    %98 = arith.addf %97, %2 : vector<16x16xf32>
    %cst_60 = arith.constant dense<0xFF800000> : vector<16xf32>
    %99 = vector.multi_reduction <maximumf>, %98, %cst_60 [1] : vector<16x16xf32> to vector<16xf32>
    %100 = vector.shape_cast %99 : vector<16xf32> to vector<16x1xf32>
    %101 = vector.broadcast %100 : vector<16x1xf32> to vector<16x16xf32>
    %102 = arith.subf %98, %101 : vector<16x16xf32>
    %103 = math.exp %102 : vector<16x16xf32>
    %cst_61 = arith.constant dense<0.000000e+00> : vector<16xf32>
    %104 = vector.multi_reduction <add>, %103, %cst_61 [1] : vector<16x16xf32> to vector<16xf32>
    %105 = vector.shape_cast %104 : vector<16xf32> to vector<16x1xf32>
    %106 = tpu.reciprocal %105 {approx = true} : vector<16x1xf32> -> vector<16x1xf32>
    %107 = arith.mulf %105, %106 : vector<16x1xf32>
    %cst_62 = arith.constant 2.000000e+00 : f32
    %108 = vector.broadcast %cst_62 : f32 to vector<16x1xf32>
    %109 = arith.subf %108, %107 : vector<16x1xf32>
    %110 = arith.mulf %106, %109 : vector<16x1xf32>
    %111 = vector.broadcast %110 : vector<16x1xf32> to vector<16x16xf32>
    %112 = arith.mulf %103, %111 : vector<16x16xf32>
    %cst_63 = arith.constant dense<0.000000e+00> : vector<16x32xf32>
    %113 = tpu.matmul %112, %93, %cst_63 {dimension_numbers = #tpu.dot_dimension_numbers<[1], [0], [0], [1], [0, 0, 1, 1], [], []>} : vector<16x16xf32>, vector<16x32xf32>, vector<16x32xf32> -> vector<16x32xf32>
    %cst_64 = arith.constant dense<0.000000e+00> : vector<16x16xf32>
    %114 = tpu.matmul %113, %88, %cst_64 {dimension_numbers = #tpu.dot_dimension_numbers<[1], [0], [0], [1], [0, 0, 1, 1], [], []>} : vector<16x32xf32>, vector<32x16xf32>, vector<16x16xf32> -> vector<16x16xf32>
    %115 = vector.broadcast %90 : vector<1x16xf32> to vector<16x16xf32>
    %116 = arith.addf %114, %115 : vector<16x16xf32>
    %cst_65 = arith.constant 0.000000e+00 : f32
    %117 = vector.broadcast %cst_65 : f32 to vector<16x16xf32>
    %118 = arith.cmpf oge, %116, %117 : vector<16x16xf32>
    %cst_66 = arith.constant 2.000000e-01 : f32
    %119 = vector.broadcast %cst_66 : f32 to vector<16x16xf32>
    %120 = arith.mulf %119, %116 : vector<16x16xf32>
    %121 = arith.select %118, %116, %120 : vector<16x16xi1>, vector<16x16xf32>
    %122 = arith.addf %121, %82 : vector<16x16xf32>
    %123 = vector.shape_cast %122 : vector<16x16xf32> to vector<2x8x16xf32>
    %c0_67 = arith.constant 0 : index
    %c0_68 = arith.constant 0 : index
    %c0_69 = arith.constant 0 : index
    %124 = vector.load %arg6[%c0_67, %c0_68, %c0_69] : memref<2x8x16xf32, #tpu.memory_space<vmem>>, vector<2x8x16xf32>
    tpu.vector_store %arg6[%c0_67, %c0_68, %c0_69], %123 {strides = array<i32>} : memref<2x8x16xf32, #tpu.memory_space<vmem>>, vector<2x8x16xf32>,
    return
  }
}

</mosaic_0001>

<llo_original>
// kernel: tpu_custom_call.1
$region0: #{tpu_custom_call.1}
  #allocation0 [shape = 'u32[]', space=smem, size = 0x4, offset = 0x4, fixed_abs, tag = 'smem constant byte address 0x4 - core index']
  #allocation1 [shape = 'u32[144,128]{1,0:T(1,128)}', space=vmem, size = 0x12000, scoped, tag = 'internal scratch']
  %s0 = inlined_call_operand.vmem [shape: f32[2,8,16], index: 0, kind: input, shape index: {}]
  %s1 = inlined_call_operand.vmem [shape: f32[16,16], index: 1, kind: input, shape index: {}]
  %s2 = inlined_call_operand.vmem [shape: f32[3,16,32], index: 2, kind: input, shape index: {}]
  %s3 = inlined_call_operand.vmem [shape: f32[3,1,32], index: 3, kind: input, shape index: {}]
  %s4 = inlined_call_operand.vmem [shape: f32[3,32,16], index: 4, kind: input, shape index: {}]
  %s5 = inlined_call_operand.vmem [shape: f32[3,1,16], index: 5, kind: input, shape index: {}]
  %s6 = inlined_call_operand.hbm [shape: f32[2,8,16], index: 6, kind: output, shape index: {}]
  %s7 = sld [smem:[#allocation0]]
  $region34: #{tpu_custom_call.1} parent=0
    _
  %s9 = ssub.s32 1, %s7
  %s10 = scalar_select 0, %s9, %s7
  $region1: #{tpu_custom_call.1} parent=0
    #allocation2 [shape = 'u8[8192]{0}', space=vmem, size = 0x2000, scoped, tag = 'output window, operand 0, single buffered']
    #allocation3 [shape = 's32[1]{0}', space=sflag, size = 0x4, scoped, tag = 'scoped memory for tpu_custom_call.1']
    %11 = vsyncpa [#allocation3], 0
    // Predicated region
    $region2: #{tpu_custom_call.1} parent=1 // pred_check
      _
    $region3: #{tpu_custom_call.1} parent=1 // pred_check_branch
      %13 = sbr.rel (0) target = $region5
    $region4: #{tpu_custom_call.1} parent=1 // pred_region
      _
    $region5: #{tpu_custom_call.1} parent=1 // pred_fallthru
      _
    // Predicated region
    $region6: #{tpu_custom_call.1} parent=1 // pred_check
      _
    $region7: #{tpu_custom_call.1} parent=1 // pred_check_branch
      %15 = sbr.rel (0) target = $region9
    $region8: #{tpu_custom_call.1} parent=1 // pred_region
      _
    $region9: #{tpu_custom_call.1} parent=1 // pred_fallthru
      _
    // Predicated region
    $region10: #{tpu_custom_call.1} parent=1 // pred_check
      _
    $region11: #{tpu_custom_call.1} parent=1 // pred_check_branch
      %17 = sbr.rel (0) target = $region13
    $region12: #{tpu_custom_call.1} parent=1 // pred_region
      _
    $region13: #{tpu_custom_call.1} parent=1 // pred_fallthru
      _
    // Predicated region
    $region14: #{tpu_custom_call.1} parent=1 // pred_check
      _
    $region15: #{tpu_custom_call.1} parent=1 // pred_check_branch
      %19 = sbr.rel (0) target = $region17
    $region16: #{tpu_custom_call.1} parent=1 // pred_region
      _
    $region17: #{tpu_custom_call.1} parent=1 // pred_fallthru
      _
    // Predicated region
    $region18: #{tpu_custom_call.1} parent=1 // pred_check
      _
    $region19: #{tpu_custom_call.1} parent=1 // pred_check_branch
      %21 = sbr.rel (0) target = $region21
    $region20: #{tpu_custom_call.1} parent=1 // pred_region
      _
    $region21: #{tpu_custom_call.1} parent=1 // pred_fallthru
      _
    // Predicated region
    $region22: #{tpu_custom_call.1} parent=1 // pred_check
      _
    $region23: #{tpu_custom_call.1} parent=1 // pred_check_branch
      %23 = sbr.rel (0) target = $region25
    $region24: #{tpu_custom_call.1} parent=1 // pred_region
      _
    $region25: #{tpu_custom_call.1} parent=1 // pred_fallthru
      _
    %v24 = vld [vmem:[%s0] sm:$0xff]
    %v25 = vld [vmem:[%s0 + $0x8] sm:$0xff]
    %v26 = vld [vmem:[%s1] sm:$0xff]
    %v27 = vld [vmem:[%s1 + $0x8] sm:$0xff]
    %v28 = vld [vmem:[%s2] sm:$0xff]
    %v29 = vld [vmem:[%s2 + $0x8] sm:$0xff]
    %v30 = vld [vmem:[%s3] sm:$0x1]
    %v31 = vld [vmem:[%s4] sm:$0xff]
    %v32 = vld [vmem:[%s4 + $0x8] sm:$0xff]
    %v33 = vld [vmem:[%s4 + $0x10] sm:$0xff]
    %v34 = vld [vmem:[%s4 + $0x18] sm:$0xff]
    %v35 = vld [vmem:[%s5] sm:$0x1]
    %v37 = vlaneseq
    %v38 = vshrl.u32 %v37, 7
    %v39 = vsub.s32 0, %v38
    %v40 = vrot.slane %v30, %v39
    %vm42 = vcmask 130048
    %v44 = vsel %vm42, %v24, 0
    %v47 = vsel %vm42, %v25, 0
    %49 = vmatprep.subr.mxu0 0.0
    %50 = vmatpush1.msra.mxu0 %v28
    %51 = vmatprep.subr.mxu0 0.0
    %52 = vmatpush1.msra.mxu0 %v29
    %53 = vmatprep.subr.mxu0 0.0
    %54 = vmatpush1.msra.mxu0 0.0
    %55 = vmatprep.subr.mxu0 0.0
    %56 = vmatpush1.msra.mxu0 0.0
    %57 = vmatprep.subr.mxu0 0.0
    %58 = vmatpush1.msra.mxu0 0.0
    %59 = vmatprep.subr.mxu0 0.0
    %60 = vmatpush1.msra.mxu0 0.0
    %61 = vmatprep.subr.mxu0 0.0
    %62 = vmatpush1.msra.mxu0 0.0
    %63 = vmatprep.subr.mxu0 0.0
    %64 = vmatpush1.msra.mxu0 0.0
    %65 = vmatprep.subr.mxu0 0.0
    %66 = vmatpush1.msra.mxu0 0.0
    %67 = vmatprep.subr.mxu0 0.0
    %68 = vmatpush1.msra.mxu0 0.0
    %69 = vmatprep.subr.mxu0 0.0
    %70 = vmatpush1.msra.mxu0 0.0
    %71 = vmatprep.subr.mxu0 0.0
    %72 = vmatpush1.msra.mxu0 0.0
    %73 = vmatprep.subr.mxu0 0.0
    %74 = vmatpush1.msra.mxu0 0.0
    %75 = vmatprep.subr.mxu0 0.0
    %76 = vmatpush1.msra.mxu0 0.0
    %77 = vmatprep.subr.mxu0 0.0
    %78 = vmatpush1.msra.mxu0 0.0
    %79 = vmatprep.subr.mxu0 0.0
    %80 = vmatpush1.msra.mxu0 0.0
    %81 = vmatprep.subr.mxu0 0.0
    %82 = vmatpush1.msra.mxu0 0.0
    %83 = vmatprep.subr.mxu0 0.0
    %84 = vmatpush1.msra.mxu0 0.0
    %85 = vmatprep.subr.mxu0 0.0
    %86 = vmatpush1.msra.mxu0 0.0
    %87 = vmatprep.subr.mxu0 0.0
    %88 = vmatpush1.msra.mxu0 0.0
    %89 = vmatprep.subr.mxu0 0.0
    %90 = vmatpush1.msra.mxu0 0.0
    %91 = vmatprep.subr.mxu0 0.0
    %92 = vmatpush1.msra.mxu0 0.0
    %93 = vmatprep.subr.mxu0 0.0
    %94 = vmatpush1.msra.mxu0 0.0
    %95 = vmatprep.subr.mxu0 0.0
    %96 = vmatpush1.msra.mxu0 0.0
    %97 = vmatprep.subr.mxu0 0.0
    %98 = vmatpush1.msra.mxu0 0.0
    %99 = vmatprep.subr.mxu0 0.0
    %100 = vmatpush1.msra.mxu0 0.0
    %101 = vmatprep.subr.mxu0 0.0
    %102 = vmatpush1.msra.mxu0 0.0
    %103 = vmatprep.subr.mxu0 0.0
    %104 = vmatpush1.msra.mxu0 0.0
    %105 = vmatprep.subr.mxu0 0.0
    %106 = vmatpush1.msra.mxu0 0.0
    %107 = vmatprep.subr.mxu0 0.0
    %108 = vmatpush1.msra.mxu0 0.0
    %109 = vmatprep.subr.mxu0 0.0
    %110 = vmatpush1.msra.mxu0 0.0
    %111 = vmatprep.subr.mxu0 0.0
    %112 = vmatpush1.msra.mxu0 0.0
    %113 = vmatprep.mubr.f32.mxu0 0.0
    %114 = vmatmul.mubr.f32.gmra.mrb[0].mxu0 %v44
    %v115 = vpop.f32.mrb[0].mxu0
    %v116 = vadd.f32 %v40, %v115
    %v117 = vpop.f32.mrb[0].mxu0
    %118 = vmatprep.mubr.f32.mxu0 0.0
    %119 = vmatmul.mubr.f32.gmra.mrb[0].mxu0 %v47
    %v120 = vpop.f32.mrb[0].mxu0
    %v121 = vadd.f32 %v40, %v120
    %v122 = vpop.f32.mrb[0].mxu0
    %123 = vdwg.mxu0
    %124 = vmatprep.subr.mxu0 0.0
    %125 = vmatpush1.xpose.msra.mxu0 %v44
    %126 = vmatprep.subr.mxu0 0.0
    %127 = vmatpush1.xpose.msra.mxu0 %v47
    %128 = vmatprep.subr.mxu0 0.0
    %129 = vmatpush1.xpose.msra.mxu0 0.0
    %130 = vmatprep.subr.mxu0 0.0
    %131 = vmatpush1.xpose.msra.mxu0 0.0
    %132 = vmatprep.subr.mxu0 0.0
    %133 = vmatpush1.xpose.msra.mxu0 0.0
    %134 = vmatprep.subr.mxu0 0.0
    %135 = vmatpush1.xpose.msra.mxu0 0.0
    %136 = vmatprep.subr.mxu0 0.0
    %137 = vmatpush1.xpose.msra.mxu0 0.0
    %138 = vmatprep.subr.mxu0 0.0
    %139 = vmatpush1.xpose.msra.mxu0 0.0
    %140 = vmatprep.subr.mxu0 0.0
    %141 = vmatpush1.xpose.msra.mxu0 0.0
    %142 = vmatprep.subr.mxu0 0.0
    %143 = vmatpush1.xpose.msra.mxu0 0.0
    %144 = vmatprep.subr.mxu0 0.0
    %145 = vmatpush1.xpose.msra.mxu0 0.0
    %146 = vmatprep.subr.mxu0 0.0
    %147 = vmatpush1.xpose.msra.mxu0 0.0
    %148 = vmatprep.subr.mxu0 0.0
    %149 = vmatpush1.xpose.msra.mxu0 0.0
    %150 = vmatprep.subr.mxu0 0.0
    %151 = vmatpush1.xpose.msra.mxu0 0.0
    %152 = vmatprep.subr.mxu0 0.0
    %153 = vmatpush1.xpose.msra.mxu0 0.0
    %154 = vmatprep.subr.mxu0 0.0
    %155 = vmatpush1.xpose.msra.mxu0 0.0
    %156 = vmatprep.subr.mxu0 0.0
    %157 = vmatpush1.xpose.msra.mxu0 0.0
    %158 = vmatprep.subr.mxu0 0.0
    %159 = vmatpush1.xpose.msra.mxu0 0.0
    %160 = vmatprep.subr.mxu0 0.0
    %161 = vmatpush1.xpose.msra.mxu0 0.0
    %162 = vmatprep.subr.mxu0 0.0
    %163 = vmatpush1.xpose.msra.mxu0 0.0
    %164 = vmatprep.subr.mxu0 0.0
    %165 = vmatpush1.xpose.msra.mxu0 0.0
    %166 = vmatprep.subr.mxu0 0.0
    %167 = vmatpush1.xpose.msra.mxu0 0.0
    %168 = vmatprep.subr.mxu0 0.0
    %169 = vmatpush1.xpose.msra.mxu0 0.0
    %170 = vmatprep.subr.mxu0 0.0
    %171 = vmatpush1.xpose.msra.mxu0 0.0
    %172 = vmatprep.subr.mxu0 0.0
    %173 = vmatpush1.xpose.msra.mxu0 0.0
    %174 = vmatprep.subr.mxu0 0.0
    %175 = vmatpush1.xpose.msra.mxu0 0.0
    %176 = vmatprep.subr.mxu0 0.0
    %177 = vmatpush1.xpose.msra.mxu0 0.0
    %178 = vmatprep.subr.mxu0 0.0
    %179 = vmatpush1.xpose.msra.mxu0 0.0
    %180 = vmatprep.subr.mxu0 0.0
    %181 = vmatpush1.xpose.msra.mxu0 0.0
    %182 = vmatprep.subr.mxu0 0.0
    %183 = vmatpush1.xpose.msra.mxu0 0.0
    %184 = vmatprep.subr.mxu0 0.0
    %185 = vmatpush1.xpose.msra.mxu0 0.0
    %186 = vmatprep.subr.mxu0 0.0
    %187 = vmatpush1.xpose.msra.mxu0 0.0
    %188 = vmatprep.mubr.f32.mxu0 0.0
    %189 = vmatmul.mubr.f32.gmra.mrb[0].mxu0 %v44
    %v190 = vpop.f32.mrb[0].mxu0
    %v191 = vadd.f32 0.0, %v190
    %v192 = vpop.f32.mrb[0].mxu0
    %193 = vmatprep.mubr.f32.mxu0 0.0
    %194 = vmatmul.mubr.f32.gmra.mrb[0].mxu0 %v47
    %v195 = vpop.f32.mrb[0].mxu0
    %v196 = vadd.f32 0.0, %v195
    %v197 = vpop.f32.mrb[0].mxu0
    %198 = vdwg.mxu0
    %v199 = vmul.f32 %v191, 0.25
    %v200 = vmul.f32 %v196, 0.25
    %v201 = vadd.f32 %v199, %v26
    %v202 = vadd.f32 %v200, %v27
    %v203 = vsel %vm42, %v201, -inf
    %204 = vmax.xlane.f32.xlu0 %v203
    %v205 = vpop.xlane.xlu0 %204
    %v206 = vsel %vm42, %v202, -inf
    %207 = vmax.xlane.f32.xlu0 %v206
    %v208 = vpop.xlane.xlu0 %207
    %v209 = vsub.f32 %v201, %v205
    %v210 = vsub.f32 %v202, %v208
    %v211 = vmul.f32 %v209, 1.442695
    %v212 = vpow.pop %v211
    %v213 = vmul.f32 %v210, 1.442695
    %v214 = vpow.pop %v213
    %v215 = vsel %vm42, %v212, 0.0
    %216 = vadd.xlane.f32.xlu0 %v215
    %v217 = vpop.xlane.xlu0 %216
    %v218 = vsel %vm42, %v214, 0.0
    %219 = vadd.xlane.f32.xlu0 %v218
    %v220 = vpop.xlane.xlu0 %219
    %v221 = vrcp.pop %v217
    %v222 = vrcp.pop %v220
    %v223 = vmul.f32 %v217, %v221
    %v224 = vmul.f32 %v220, %v222
    %v225 = vsub.f32 2.0, %v223
    %v226 = vsub.f32 2.0, %v224
    %v227 = vmul.f32 %v221, %v225
    %v228 = vmul.f32 %v222, %v226
    %v229 = vmul.f32 %v212, %v227
    %v230 = vmul.f32 %v214, %v228
    %v232 = vsel %vm42, %v229, 0
    %v235 = vsel %vm42, %v230, 0
    %237 = vmatprep.subr.mxu0 0.0
    %238 = vmatpush1.msra.mxu0 %v116
    %239 = vmatprep.subr.mxu0 0.0
    %240 = vmatpush1.msra.mxu0 %v121
    %241 = vmatprep.subr.mxu0 0.0
    %242 = vmatpush1.msra.mxu0 0.0
    %243 = vmatprep.subr.mxu0 0.0
    %244 = vmatpush1.msra.mxu0 0.0
    %245 = vmatprep.subr.mxu0 0.0
    %246 = vmatpush1.msra.mxu0 0.0
    %247 = vmatprep.subr.mxu0 0.0
    %248 = vmatpush1.msra.mxu0 0.0
    %249 = vmatprep.subr.mxu0 0.0
    %250 = vmatpush1.msra.mxu0 0.0
    %251 = vmatprep.subr.mxu0 0.0
    %252 = vmatpush1.msra.mxu0 0.0
    %253 = vmatprep.subr.mxu0 0.0
    %254 = vmatpush1.msra.mxu0 0.0
    %255 = vmatprep.subr.mxu0 0.0
    %256 = vmatpush1.msra.mxu0 0.0
    %257 = vmatprep.subr.mxu0 0.0
    %258 = vmatpush1.msra.mxu0 0.0
    %259 = vmatprep.subr.mxu0 0.0
    %260 = vmatpush1.msra.mxu0 0.0
    %261 = vmatprep.subr.mxu0 0.0
    %262 = vmatpush1.msra.mxu0 0.0
    %263 = vmatprep.subr.mxu0 0.0
    %264 = vmatpush1.msra.mxu0 0.0
    %265 = vmatprep.subr.mxu0 0.0
    %266 = vmatpush1.msra.mxu0 0.0
    %267 = vmatprep.subr.mxu0 0.0
    %268 = vmatpush1.msra.mxu0 0.0
    %269 = vmatprep.subr.mxu0 0.0
    %270 = vmatpush1.msra.mxu0 0.0
    %271 = vmatprep.subr.mxu0 0.0
    %272 = vmatpush1.msra.mxu0 0.0
    %273 = vmatprep.subr.mxu0 0.0
    %274 = vmatpush1.msra.mxu0 0.0
    %275 = vmatprep.subr.mxu0 0.0
    %276 = vmatpush1.msra.mxu0 0.0
    %277 = vmatprep.subr.mxu0 0.0
    %278 = vmatpush1.msra.mxu0 0.0
    %279 = vmatprep.subr.mxu0 0.0
    %280 = vmatpush1.msra.mxu0 0.0
    %281 = vmatprep.subr.mxu0 0.0
    %282 = vmatpush1.msra.mxu0 0.0
    %283 = vmatprep.subr.mxu0 0.0
    %284 = vmatpush1.msra.mxu0 0.0
    %285 = vmatprep.subr.mxu0 0.0
    %286 = vmatpush1.msra.mxu0 0.0
    %287 = vmatprep.subr.mxu0 0.0
    %288 = vmatpush1.msra.mxu0 0.0
    %289 = vmatprep.subr.mxu0 0.0
    %290 = vmatpush1.msra.mxu0 0.0
    %291 = vmatprep.subr.mxu0 0.0
    %292 = vmatpush1.msra.mxu0 0.0
    %293 = vmatprep.subr.mxu0 0.0
    %294 = vmatpush1.msra.mxu0 0.0
    %295 = vmatprep.subr.mxu0 0.0
    %296 = vmatpush1.msra.mxu0 0.0
    %297 = vmatprep.subr.mxu0 0.0
    %298 = vmatpush1.msra.mxu0 0.0
    %299 = vmatprep.subr.mxu0 0.0
    %300 = vmatpush1.msra.mxu0 0.0
    %301 = vmatprep.mubr.f32.mxu0 0.0
    %302 = vmatmul.mubr.f32.gmra.mrb[0].mxu0 %v232
    %v303 = vpop.f32.mrb[0].mxu0
    %v304 = vadd.f32 0.0, %v303
    %v305 = vpop.f32.mrb[0].mxu0
    %306 = vmatprep.mubr.f32.mxu0 0.0
    %307 = vmatmul.mubr.f32.gmra.mrb[0].mxu0 %v235
    %v308 = vpop.f32.mrb[0].mxu0
    %v309 = vadd.f32 0.0, %v308
    %v310 = vpop.f32.mrb[0].mxu0
    %311 = vdwg.mxu0
    %v313 = vlaneseq
    %v314 = vshrl.u32 %v313, 7
    %v315 = vsub.s32 0, %v314
    %v316 = vrot.slane %v35, %v315
    %vm318 = vcmask 261120
    %v320 = vsel %vm318, %v304, 0
    %v323 = vsel %vm318, %v309, 0
    %325 = vmatprep.subr.mxu0 0.0
    %326 = vmatpush1.msra.mxu0 %v31
    %327 = vmatprep.subr.mxu0 0.0
    %328 = vmatpush1.msra.mxu0 %v32
    %329 = vmatprep.subr.mxu0 0.0
    %330 = vmatpush1.msra.mxu0 %v33
    %331 = vmatprep.subr.mxu0 0.0
    %332 = vmatpush1.msra.mxu0 %v34
    %333 = vmatprep.subr.mxu0 0.0
    %334 = vmatpush1.msra.mxu0 0.0
    %335 = vmatprep.subr.mxu0 0.0
    %336 = vmatpush1.msra.mxu0 0.0
    %337 = vmatprep.subr.mxu0 0.0
    %338 = vmatpush1.msra.mxu0 0.0
    %339 = vmatprep.subr.mxu0 0.0
    %340 = vmatpush1.msra.mxu0 0.0
    %341 = vmatprep.subr.mxu0 0.0
    %342 = vmatpush1.msra.mxu0 0.0
    %343 = vmatprep.subr.mxu0 0.0
    %344 = vmatpush1.msra.mxu0 0.0
    %345 = vmatprep.subr.mxu0 0.0
    %346 = vmatpush1.msra.mxu0 0.0
    %347 = vmatprep.subr.mxu0 0.0
    %348 = vmatpush1.msra.mxu0 0.0
    %349 = vmatprep.subr.mxu0 0.0
    %350 = vmatpush1.msra.mxu0 0.0
    %351 = vmatprep.subr.mxu0 0.0
    %352 = vmatpush1.msra.mxu0 0.0
    %353 = vmatprep.subr.mxu0 0.0
    %354 = vmatpush1.msra.mxu0 0.0
    %355 = vmatprep.subr.mxu0 0.0
    %356 = vmatpush1.msra.mxu0 0.0
    %357 = vmatprep.subr.mxu0 0.0
    %358 = vmatpush1.msra.mxu0 0.0
    %359 = vmatprep.subr.mxu0 0.0
    %360 = vmatpush1.msra.mxu0 0.0
    %361 = vmatprep.subr.mxu0 0.0
    %362 = vmatpush1.msra.mxu0 0.0
    %363 = vmatprep.subr.mxu0 0.0
    %364 = vmatpush1.msra.mxu0 0.0
    %365 = vmatprep.subr.mxu0 0.0
    %366 = vmatpush1.msra.mxu0 0.0
    %367 = vmatprep.subr.mxu0 0.0
    %368 = vmatpush1.msra.mxu0 0.0
    %369 = vmatprep.subr.mxu0 0.0
    %370 = vmatpush1.msra.mxu0 0.0
    %371 = vmatprep.subr.mxu0 0.0
    %372 = vmatpush1.msra.mxu0 0.0
    %373 = vmatprep.subr.mxu0 0.0
    %374 = vmatpush1.msra.mxu0 0.0
    %375 = vmatprep.subr.mxu0 0.0
    %376 = vmatpush1.msra.mxu0 0.0
    %377 = vmatprep.subr.mxu0 0.0
    %378 = vmatpush1.msra.mxu0 0.0
    %379 = vmatprep.subr.mxu0 0.0
    %380 = vmatpush1.msra.mxu0 0.0
    %381 = vmatprep.subr.mxu0 0.0
    %382 = vmatpush1.msra.mxu0 0.0
    %383 = vmatprep.subr.mxu0 0.0
    %384 = vmatpush1.msra.mxu0 0.0
    %385 = vmatprep.subr.mxu0 0.0
    %386 = vmatpush1.msra.mxu0 0.0
    %387 = vmatprep.subr.mxu0 0.0
    %388 = vmatpush1.msra.mxu0 0.0
    %389 = vmatprep.mubr.f32.mxu0 0.0
    %390 = vmatmul.mubr.f32.gmra.mrb[0].mxu0 %v320
    %v391 = vpop.f32.mrb[0].mxu0
    %v392 = vadd.f32 %v316, %v391
    %v393 = vpop.f32.mrb[0].mxu0
    %394 = vmatprep.mubr.f32.mxu0 0.0
    %395 = vmatmul.mubr.f32.gmra.mrb[0].mxu0 %v323
    %v396 = vpop.f32.mrb[0].mxu0
    %v397 = vadd.f32 %v316, %v396
    %v398 = vpop.f32.mrb[0].mxu0
    %399 = vdwg.mxu0
    %vm400 = vcmp.ge.f32.partialorder %v392, 0.0
    %vm401 = vcmp.ge.f32.partialorder %v397, 0.0
    %v402 = vmul.f32 %v392, 0.2
    %v403 = vmul.f32 %v397, 0.2
    %v404 = vsel %vm400, %v392, %v402
    %v405 = vsel %vm401, %v397, %v403
    %v406 = vadd.f32 %v404, %v24
    %v407 = vadd.f32 %v405, %v25
    %s408 = scalar_lea.vmem %s2, 16
    %v409 = vld [vmem:[%s408] sm:$0xff]
    %v410 = vld [vmem:[%s408 + $0x8] sm:$0xff]
    %s411 = scalar_lea.vmem %s3, 1
    %v412 = vld [vmem:[%s411] sm:$0x1]
    %s413 = scalar_lea.vmem %s4, 32
    %v414 = vld [vmem:[%s413] sm:$0xff]
    %v415 = vld [vmem:[%s413 + $0x8] sm:$0xff]
    %v416 = vld [vmem:[%s413 + $0x10] sm:$0xff]
    %v417 = vld [vmem:[%s413 + $0x18] sm:$0xff]
    %s418 = scalar_lea.vmem %s5, 1
    %v419 = vld [vmem:[%s418] sm:$0x1]
    %v421 = vlaneseq
    %v422 = vshrl.u32 %v421, 7
    %v423 = vsub.s32 0, %v422
    %v424 = vrot.slane %v412, %v423
    %v427 = vsel %vm42, %v406, 0
    %v430 = vsel %vm42, %v407, 0
    %432 = vmatprep.subr.mxu0 0.0
    %433 = vmatpush1.msra.mxu0 %v409
    %434 = vmatprep.subr.mxu0 0.0
    %435 = vmatpush1.msra.mxu0 %v410
    %436 = vmatprep.subr.mxu0 0.0
    %437 = vmatpush1.msra.mxu0 0.0
    %438 = vmatprep.subr.mxu0 0.0
    %439 = vmatpush1.msra.mxu0 0.0
    %440 = vmatprep.subr.mxu0 0.0
    %441 = vmatpush1.msra.mxu0 0.0
    %442 = vmatprep.subr.mxu0 0.0
    %443 = vmatpush1.msra.mxu0 0.0
    %444 = vmatprep.subr.mxu0 0.0
    %445 = vmatpush1.msra.mxu0 0.0
    %446 = vmatprep.subr.mxu0 0.0
    %447 = vmatpush1.msra.mxu0 0.0
    %448 = vmatprep.subr.mxu0 0.0
    %449 = vmatpush1.msra.mxu0 0.0
    %450 = vmatprep.subr.mxu0 0.0
    %451 = vmatpush1.msra.mxu0 0.0
    %452 = vmatprep.subr.mxu0 0.0
    %453 = vmatpush1.msra.mxu0 0.0
    %454 = vmatprep.subr.mxu0 0.0
    %455 = vmatpush1.msra.mxu0 0.0
    %456 = vmatprep.subr.mxu0 0.0
    %457 = vmatpush1.msra.mxu0 0.0
    %458 = vmatprep.subr.mxu0 0.0
    %459 = vmatpush1.msra.mxu0 0.0
    %460 = vmatprep.subr.mxu0 0.0
    %461 = vmatpush1.msra.mxu0 0.0
    %462 = vmatprep.subr.mxu0 0.0
    %463 = vmatpush1.msra.mxu0 0.0
    %464 = vmatprep.subr.mxu0 0.0
    %465 = vmatpush1.msra.mxu0 0.0
    %466 = vmatprep.subr.mxu0 0.0
    %467 = vmatpush1.msra.mxu0 0.0
    %468 = vmatprep.subr.mxu0 0.0
    %469 = vmatpush1.msra.mxu0 0.0
    %470 = vmatprep.subr.mxu0 0.0
    %471 = vmatpush1.msra.mxu0 0.0
    %472 = vmatprep.subr.mxu0 0.0
    %473 = vmatpush1.msra.mxu0 0.0
    %474 = vmatprep.subr.mxu0 0.0
    %475 = vmatpush1.msra.mxu0 0.0
    %476 = vmatprep.subr.mxu0 0.0
    %477 = vmatpush1.msra.mxu0 0.0
    %478 = vmatprep.subr.mxu0 0.0
    %479 = vmatpush1.msra.mxu0 0.0
    %480 = vmatprep.subr.mxu0 0.0
    %481 = vmatpush1.msra.mxu0 0.0
    %482 = vmatprep.subr.mxu0 0.0
    %483 = vmatpush1.msra.mxu0 0.0
    %484 = vmatprep.subr.mxu0 0.0
    %485 = vmatpush1.msra.mxu0 0.0
    %486 = vmatprep.subr.mxu0 0.0
    %487 = vmatpush1.msra.mxu0 0.0
    %488 = vmatprep.subr.mxu0 0.0
    %489 = vmatpush1.msra.mxu0 0.0
    %490 = vmatprep.subr.mxu0 0.0
    %491 = vmatpush1.msra.mxu0 0.0
    %492 = vmatprep.subr.mxu0 0.0
    %493 = vmatpush1.msra.mxu0 0.0
    %494 = vmatprep.subr.mxu0 0.0
    %495 = vmatpush1.msra.mxu0 0.0
    %496 = vmatprep.mubr.f32.mxu0 0.0
    %497 = vmatmul.mubr.f32.gmra.mrb[0].mxu0 %v427
    %v498 = vpop.f32.mrb[0].mxu0
    %v499 = vadd.f32 %v424, %v498
    %v500 = vpop.f32.mrb[0].mxu0
    %501 = vmatprep.mubr.f32.mxu0 0.0
    %502 = vmatmul.mubr.f32.gmra.mrb[0].mxu0 %v430
    %v503 = vpop.f32.mrb[0].mxu0
    %v504 = vadd.f32 %v424, %v503
    %v505 = vpop.f32.mrb[0].mxu0
    %506 = vdwg.mxu0
    %507 = vmatprep.subr.mxu0 0.0
    %508 = vmatpush1.xpose.msra.mxu0 %v427
    %509 = vmatprep.subr.mxu0 0.0
    %510 = vmatpush1.xpose.msra.mxu0 %v430
    %511 = vmatprep.subr.mxu0 0.0
    %512 = vmatpush1.xpose.msra.mxu0 0.0
    %513 = vmatprep.subr.mxu0 0.0
    %514 = vmatpush1.xpose.msra.mxu0 0.0
    %515 = vmatprep.subr.mxu0 0.0
    %516 = vmatpush1.xpose.msra.mxu0 0.0
    %517 = vmatprep.subr.mxu0 0.0
    %518 = vmatpush1.xpose.msra.mxu0 0.0
    %519 = vmatprep.subr.mxu0 0.0
    %520 = vmatpush1.xpose.msra.mxu0 0.0
    %521 = vmatprep.subr.mxu0 0.0
    %522 = vmatpush1.xpose.msra.mxu0 0.0
    %523 = vmatprep.subr.mxu0 0.0
    %524 = vmatpush1.xpose.msra.mxu0 0.0
    %525 = vmatprep.subr.mxu0 0.0
    %526 = vmatpush1.xpose.msra.mxu0 0.0
    %527 = vmatprep.subr.mxu0 0.0
    %528 = vmatpush1.xpose.msra.mxu0 0.0
    %529 = vmatprep.subr.mxu0 0.0
    %530 = vmatpush1.xpose.msra.mxu0 0.0
    %531 = vmatprep.subr.mxu0 0.0
    %532 = vmatpush1.xpose.msra.mxu0 0.0
    %533 = vmatprep.subr.mxu0 0.0
    %534 = vmatpush1.xpose.msra.mxu0 0.0
    %535 = vmatprep.subr.mxu0 0.0
    %536 = vmatpush1.xpose.msra.mxu0 0.0
    %537 = vmatprep.subr.mxu0 0.0
    %538 = vmatpush1.xpose.msra.mxu0 0.0
    %539 = vmatprep.subr.mxu0 0.0
    %540 = vmatpush1.xpose.msra.mxu0 0.0
    %541 = vmatprep.subr.mxu0 0.0
    %542 = vmatpush1.xpose.msra.mxu0 0.0
    %543 = vmatprep.subr.mxu0 0.0
    %544 = vmatpush1.xpose.msra.mxu0 0.0
    %545 = vmatprep.subr.mxu0 0.0
    %546 = vmatpush1.xpose.msra.mxu0 0.0
    %547 = vmatprep.subr.mxu0 0.0
    %548 = vmatpush1.xpose.msra.mxu0 0.0
    %549 = vmatprep.subr.mxu0 0.0
    %550 = vmatpush1.xpose.msra.mxu0 0.0
    %551 = vmatprep.subr.mxu0 0.0
    %552 = vmatpush1.xpose.msra.mxu0 0.0
    %553 = vmatprep.subr.mxu0 0.0
    %554 = vmatpush1.xpose.msra.mxu0 0.0
    %555 = vmatprep.subr.mxu0 0.0
    %556 = vmatpush1.xpose.msra.mxu0 0.0
    %557 = vmatprep.subr.mxu0 0.0
    %558 = vmatpush1.xpose.msra.mxu0 0.0
    %559 = vmatprep.subr.mxu0 0.0
    %560 = vmatpush1.xpose.msra.mxu0 0.0
    %561 = vmatprep.subr.mxu0 0.0
    %562 = vmatpush1.xpose.msra.mxu0 0.0
    %563 = vmatprep.subr.mxu0 0.0
    %564 = vmatpush1.xpose.msra.mxu0 0.0
    %565 = vmatprep.subr.mxu0 0.0
    %566 = vmatpush1.xpose.msra.mxu0 0.0
    %567 = vmatprep.subr.mxu0 0.0
    %568 = vmatpush1.xpose.msra.mxu0 0.0
    %569 = vmatprep.subr.mxu0 0.0
    %570 = vmatpush1.xpose.msra.mxu0 0.0
    %571 = vmatprep.mubr.f32.mxu0 0.0
    %572 = vmatmul.mubr.f32.gmra.mrb[0].mxu0 %v427
    %v573 = vpop.f32.mrb[0].mxu0
    %v574 = vadd.f32 0.0, %v573
    %v575 = vpop.f32.mrb[0].mxu0
    %576 = vmatprep.mubr.f32.mxu0 0.0
    %577 = vmatmul.mubr.f32.gmra.mrb[0].mxu0 %v430
    %v578 = vpop.f32.mrb[0].mxu0
    %v579 = vadd.f32 0.0, %v578
    %v580 = vpop.f32.mrb[0].mxu0
    %581 = vdwg.mxu0
    %v582 = vmul.f32 %v574, 0.25
    %v583 = vmul.f32 %v579, 0.25
    %v584 = vadd.f32 %v582, %v26
    %v585 = vadd.f32 %v583, %v27
    %v586 = vsel %vm42, %v584, -inf
    %587 = vmax.xlane.f32.xlu0 %v586
    %v588 = vpop.xlane.xlu0 %587
    %v589 = vsel %vm42, %v585, -inf
    %590 = vmax.xlane.f32.xlu0 %v589
    %v591 = vpop.xlane.xlu0 %590
    %v592 = vsub.f32 %v584, %v588
    %v593 = vsub.f32 %v585, %v591
    %v594 = vmul.f32 %v592, 1.442695
    %v595 = vpow.pop %v594
    %v596 = vmul.f32 %v593, 1.442695
    %v597 = vpow.pop %v596
    %v598 = vsel %vm42, %v595, 0.0
    %599 = vadd.xlane.f32.xlu0 %v598
    %v600 = vpop.xlane.xlu0 %599
    %v601 = vsel %vm42, %v597, 0.0
    %602 = vadd.xlane.f32.xlu0 %v601
    %v603 = vpop.xlane.xlu0 %602
    %v604 = vrcp.pop %v600
    %v605 = vrcp.pop %v603
    %v606 = vmul.f32 %v600, %v604
    %v607 = vmul.f32 %v603, %v605
    %v608 = vsub.f32 2.0, %v606
    %v609 = vsub.f32 2.0, %v607
    %v610 = vmul.f32 %v604, %v608
    %v611 = vmul.f32 %v605, %v609
    %v612 = vmul.f32 %v595, %v610
    %v613 = vmul.f32 %v597, %v611
    %v615 = vsel %vm42, %v612, 0
    %v618 = vsel %vm42, %v613, 0
    %620 = vmatprep.subr.mxu0 0.0
    %621 = vmatpush1.msra.mxu0 %v499
    %622 = vmatprep.subr.mxu0 0.0
    %623 = vmatpush1.msra.mxu0 %v504
    %624 = vmatprep.subr.mxu0 0.0
    %625 = vmatpush1.msra.mxu0 0.0
    %626 = vmatprep.subr.mxu0 0.0
    %627 = vmatpush1.msra.mxu0 0.0
    %628 = vmatprep.subr.mxu0 0.0
    %629 = vmatpush1.msra.mxu0 0.0
    %630 = vmatprep.subr.mxu0 0.0
    %631 = vmatpush1.msra.mxu0 0.0
    %632 = vmatprep.subr.mxu0 0.0
    %633 = vmatpush1.msra.mxu0 0.0
    %634 = vmatprep.subr.mxu0 0.0
    %635 = vmatpush1.msra.mxu0 0.0
    %636 = vmatprep.subr.mxu0 0.0
    %637 = vmatpush1.msra.mxu0 0.0
    %638 = vmatprep.subr.mxu0 0.0
    %639 = vmatpush1.msra.mxu0 0.0
    %640 = vmatprep.subr.mxu0 0.0
    %641 = vmatpush1.msra.mxu0 0.0
    %642 = vmatprep.subr.mxu0 0.0
    %643 = vmatpush1.msra.mxu0 0.0
    %644 = vmatprep.subr.mxu0 0.0
    %645 = vmatpush1.msra.mxu0 0.0
    %646 = vmatprep.subr.mxu0 0.0
    %647 = vmatpush1.msra.mxu0 0.0
    %648 = vmatprep.subr.mxu0 0.0
    %649 = vmatpush1.msra.mxu0 0.0
    %650 = vmatprep.subr.mxu0 0.0
    %651 = vmatpush1.msra.mxu0 0.0
    %652 = vmatprep.subr.mxu0 0.0
    %653 = vmatpush1.msra.mxu0 0.0
    %654 = vmatprep.subr.mxu0 0.0
    %655 = vmatpush1.msra.mxu0 0.0
    %656 = vmatprep.subr.mxu0 0.0
    %657 = vmatpush1.msra.mxu0 0.0
    %658 = vmatprep.subr.mxu0 0.0
    %659 = vmatpush1.msra.mxu0 0.0
    %660 = vmatprep.subr.mxu0 0.0
    %661 = vmatpush1.msra.mxu0 0.0
    %662 = vmatprep.subr.mxu0 0.0
    %663 = vmatpush1.msra.mxu0 0.0
    %664 = vmatprep.subr.mxu0 0.0
    %665 = vmatpush1.msra.mxu0 0.0
    %666 = vmatprep.subr.mxu0 0.0
    %667 = vmatpush1.msra.mxu0 0.0
    %668 = vmatprep.subr.mxu0 0.0
    %669 = vmatpush1.msra.mxu0 0.0
    %670 = vmatprep.subr.mxu0 0.0
    %671 = vmatpush1.msra.mxu0 0.0
    %672 = vmatprep.subr.mxu0 0.0
    %673 = vmatpush1.msra.mxu0 0.0
    %674 = vmatprep.subr.mxu0 0.0
    %675 = vmatpush1.msra.mxu0 0.0
    %676 = vmatprep.subr.mxu0 0.0
    %677 = vmatpush1.msra.mxu0 0.0
    %678 = vmatprep.subr.mxu0 0.0
    %679 = vmatpush1.msra.mxu0 0.0
    %680 = vmatprep.subr.mxu0 0.0
    %681 = vmatpush1.msra.mxu0 0.0
    %682 = vmatprep.subr.mxu0 0.0
    %683 = vmatpush1.msra.mxu0 0.0
    %684 = vmatprep.mubr.f32.mxu0 0.0
    %685 = vmatmul.mubr.f32.gmra.mrb[0].mxu0 %v615
    %v686 = vpop.f32.mrb[0].mxu0
    %v687 = vadd.f32 0.0, %v686
    %v688 = vpop.f32.mrb[0].mxu0
    %689 = vmatprep.mubr.f32.mxu0 0.0
    %690 = vmatmul.mubr.f32.gmra.mrb[0].mxu0 %v618
    %v691 = vpop.f32.mrb[0].mxu0
    %v692 = vadd.f32 0.0, %v691
    %v693 = vpop.f32.mrb[0].mxu0
    %694 = vdwg.mxu0
    %v696 = vlaneseq
    %v697 = vshrl.u32 %v696, 7
    %v698 = vsub.s32 0, %v697
    %v699 = vrot.slane %v419, %v698
    %v702 = vsel %vm318, %v687, 0
    %v705 = vsel %vm318, %v692, 0
    %707 = vmatprep.subr.mxu0 0.0
    %708 = vmatpush1.msra.mxu0 %v414
    %709 = vmatprep.subr.mxu0 0.0
    %710 = vmatpush1.msra.mxu0 %v415
    %711 = vmatprep.subr.mxu0 0.0
    %712 = vmatpush1.msra.mxu0 %v416
    %713 = vmatprep.subr.mxu0 0.0
    %714 = vmatpush1.msra.mxu0 %v417
    %715 = vmatprep.subr.mxu0 0.0
    %716 = vmatpush1.msra.mxu0 0.0
    %717 = vmatprep.subr.mxu0 0.0
    %718 = vmatpush1.msra.mxu0 0.0
    %719 = vmatprep.subr.mxu0 0.0
    %720 = vmatpush1.msra.mxu0 0.0
    %721 = vmatprep.subr.mxu0 0.0
    %722 = vmatpush1.msra.mxu0 0.0
    %723 = vmatprep.subr.mxu0 0.0
    %724 = vmatpush1.msra.mxu0 0.0
    %725 = vmatprep.subr.mxu0 0.0
    %726 = vmatpush1.msra.mxu0 0.0
    %727 = vmatprep.subr.mxu0 0.0
    %728 = vmatpush1.msra.mxu0 0.0
    %729 = vmatprep.subr.mxu0 0.0
    %730 = vmatpush1.msra.mxu0 0.0
    %731 = vmatprep.subr.mxu0 0.0
    %732 = vmatpush1.msra.mxu0 0.0
    %733 = vmatprep.subr.mxu0 0.0
    %734 = vmatpush1.msra.mxu0 0.0
    %735 = vmatprep.subr.mxu0 0.0
    %736 = vmatpush1.msra.mxu0 0.0
    %737 = vmatprep.subr.mxu0 0.0
    %738 = vmatpush1.msra.mxu0 0.0
    %739 = vmatprep.subr.mxu0 0.0
    %740 = vmatpush1.msra.mxu0 0.0
    %741 = vmatprep.subr.mxu0 0.0
    %742 = vmatpush1.msra.mxu0 0.0
    %743 = vmatprep.subr.mxu0 0.0
    %744 = vmatpush1.msra.mxu0 0.0
    %745 = vmatprep.subr.mxu0 0.0
    %746 = vmatpush1.msra.mxu0 0.0
    %747 = vmatprep.subr.mxu0 0.0
    %748 = vmatpush1.msra.mxu0 0.0
    %749 = vmatprep.subr.mxu0 0.0
    %750 = vmatpush1.msra.mxu0 0.0
    %751 = vmatprep.subr.mxu0 0.0
    %752 = vmatpush1.msra.mxu0 0.0
    %753 = vmatprep.subr.mxu0 0.0
    %754 = vmatpush1.msra.mxu0 0.0
    %755 = vmatprep.subr.mxu0 0.0
    %756 = vmatpush1.msra.mxu0 0.0
    %757 = vmatprep.subr.mxu0 0.0
    %758 = vmatpush1.msra.mxu0 0.0
    %759 = vmatprep.subr.mxu0 0.0
    %760 = vmatpush1.msra.mxu0 0.0
    %761 = vmatprep.subr.mxu0 0.0
    %762 = vmatpush1.msra.mxu0 0.0
    %763 = vmatprep.subr.mxu0 0.0
    %764 = vmatpush1.msra.mxu0 0.0
    %765 = vmatprep.subr.mxu0 0.0
    %766 = vmatpush1.msra.mxu0 0.0
    %767 = vmatprep.subr.mxu0 0.0
    %768 = vmatpush1.msra.mxu0 0.0
    %769 = vmatprep.subr.mxu0 0.0
    %770 = vmatpush1.msra.mxu0 0.0
    %771 = vmatprep.mubr.f32.mxu0 0.0
    %772 = vmatmul.mubr.f32.gmra.mrb[0].mxu0 %v702
    %v773 = vpop.f32.mrb[0].mxu0
    %v774 = vadd.f32 %v699, %v773
    %v775 = vpop.f32.mrb[0].mxu0
    %776 = vmatprep.mubr.f32.mxu0 0.0
    %777 = vmatmul.mubr.f32.gmra.mrb[0].mxu0 %v705
    %v778 = vpop.f32.mrb[0].mxu0
    %v779 = vadd.f32 %v699, %v778
    %v780 = vpop.f32.mrb[0].mxu0
    %781 = vdwg.mxu0
    %vm782 = vcmp.ge.f32.partialorder %v774, 0.0
    %vm783 = vcmp.ge.f32.partialorder %v779, 0.0
    %v784 = vmul.f32 %v774, 0.2
    %v785 = vmul.f32 %v779, 0.2
    %v786 = vsel %vm782, %v774, %v784
    %v787 = vsel %vm783, %v779, %v785
    %v788 = vadd.f32 %v786, %v406
    %v789 = vadd.f32 %v787, %v407
    %s790 = scalar_lea.vmem %s2, 32
    %v791 = vld [vmem:[%s790] sm:$0xff]
    %v792 = vld [vmem:[%s790 + $0x8] sm:$0xff]
    %s793 = scalar_lea.vmem %s3, 2
    %v794 = vld [vmem:[%s793] sm:$0x1]
    %s795 = scalar_lea.vmem %s4, 64
    %v796 = vld [vmem:[%s795] sm:$0xff]
    %v797 = vld [vmem:[%s795 + $0x8] sm:$0xff]
    %v798 = vld [vmem:[%s795 + $0x10] sm:$0xff]
    %v799 = vld [vmem:[%s795 + $0x18] sm:$0xff]
    %s800 = scalar_lea.vmem %s5, 2
    %v801 = vld [vmem:[%s800] sm:$0x1]
    %v803 = vlaneseq
    %v804 = vshrl.u32 %v803, 7
    %v805 = vsub.s32 0, %v804
    %v806 = vrot.slane %v794, %v805
    %v809 = vsel %vm42, %v788, 0
    %v812 = vsel %vm42, %v789, 0
    %814 = vmatprep.subr.mxu0 0.0
    %815 = vmatpush1.msra.mxu0 %v791
    %816 = vmatprep.subr.mxu0 0.0
    %817 = vmatpush1.msra.mxu0 %v792
    %818 = vmatprep.subr.mxu0 0.0
    %819 = vmatpush1.msra.mxu0 0.0
    %820 = vmatprep.subr.mxu0 0.0
    %821 = vmatpush1.msra.mxu0 0.0
    %822 = vmatprep.subr.mxu0 0.0
    %823 = vmatpush1.msra.mxu0 0.0
    %824 = vmatprep.subr.mxu0 0.0
    %825 = vmatpush1.msra.mxu0 0.0
    %826 = vmatprep.subr.mxu0 0.0
    %827 = vmatpush1.msra.mxu0 0.0
    %828 = vmatprep.subr.mxu0 0.0
    %829 = vmatpush1.msra.mxu0 0.0
    %830 = vmatprep.subr.mxu0 0.0
    %831 = vmatpush1.msra.mxu0 0.0
    %832 = vmatprep.subr.mxu0 0.0
    %833 = vmatpush1.msra.mxu0 0.0
    %834 = vmatprep.subr.mxu0 0.0
    %835 = vmatpush1.msra.mxu0 0.0
    %836 = vmatprep.subr.mxu0 0.0
    %837 = vmatpush1.msra.mxu0 0.0
    %838 = vmatprep.subr.mxu0 0.0
    %839 = vmatpush1.msra.mxu0 0.0
    %840 = vmatprep.subr.mxu0 0.0
    %841 = vmatpush1.msra.mxu0 0.0
    %842 = vmatprep.subr.mxu0 0.0
    %843 = vmatpush1.msra.mxu0 0.0
    %844 = vmatprep.subr.mxu0 0.0
    %845 = vmatpush1.msra.mxu0 0.0
    %846 = vmatprep.subr.mxu0 0.0
    %847 = vmatpush1.msra.mxu0 0.0
    %848 = vmatprep.subr.mxu0 0.0
    %849 = vmatpush1.msra.mxu0 0.0
    %850 = vmatprep.subr.mxu0 0.0
    %851 = vmatpush1.msra.mxu0 0.0
    %852 = vmatprep.subr.mxu0 0.0
    %853 = vmatpush1.msra.mxu0 0.0
    %854 = vmatprep.subr.mxu0 0.0
    %855 = vmatpush1.msra.mxu0 0.0
    %856 = vmatprep.subr.mxu0 0.0
    %857 = vmatpush1.msra.mxu0 0.0
    %858 = vmatprep.subr.mxu0 0.0
    %859 = vmatpush1.msra.mxu0 0.0
    %860 = vmatprep.subr.mxu0 0.0
    %861 = vmatpush1.msra.mxu0 0.0
    %862 = vmatprep.subr.mxu0 0.0
    %863 = vmatpush1.msra.mxu0 0.0
    %864 = vmatprep.subr.mxu0 0.0
    %865 = vmatpush1.msra.mxu0 0.0
    %866 = vmatprep.subr.mxu0 0.0
    %867 = vmatpush1.msra.mxu0 0.0
    %868 = vmatprep.subr.mxu0 0.0
    %869 = vmatpush1.msra.mxu0 0.0
    %870 = vmatprep.subr.mxu0 0.0
    %871 = vmatpush1.msra.mxu0 0.0
    %872 = vmatprep.subr.mxu0 0.0
    %873 = vmatpush1.msra.mxu0 0.0
    %874 = vmatprep.subr.mxu0 0.0
    %875 = vmatpush1.msra.mxu0 0.0
    %876 = vmatprep.subr.mxu0 0.0
    %877 = vmatpush1.msra.mxu0 0.0
    %878 = vmatprep.mubr.f32.mxu0 0.0
    %879 = vmatmul.mubr.f32.gmra.mrb[0].mxu0 %v809
    %v880 = vpop.f32.mrb[0].mxu0
    %v881 = vadd.f32 %v806, %v880
    %v882 = vpop.f32.mrb[0].mxu0
    %883 = vmatprep.mubr.f32.mxu0 0.0
    %884 = vmatmul.mubr.f32.gmra.mrb[0].mxu0 %v812
    %v885 = vpop.f32.mrb[0].mxu0
    %v886 = vadd.f32 %v806, %v885
    %v887 = vpop.f32.mrb[0].mxu0
    %888 = vdwg.mxu0
    %889 = vmatprep.subr.mxu0 0.0
    %890 = vmatpush1.xpose.msra.mxu0 %v809
    %891 = vmatprep.subr.mxu0 0.0
    %892 = vmatpush1.xpose.msra.mxu0 %v812
    %893 = vmatprep.subr.mxu0 0.0
    %894 = vmatpush1.xpose.msra.mxu0 0.0
    %895 = vmatprep.subr.mxu0 0.0
    %896 = vmatpush1.xpose.msra.mxu0 0.0
    %897 = vmatprep.subr.mxu0 0.0
    %898 = vmatpush1.xpose.msra.mxu0 0.0
    %899 = vmatprep.subr.mxu0 0.0
    %900 = vmatpush1.xpose.msra.mxu0 0.0
    %901 = vmatprep.subr.mxu0 0.0
    %902 = vmatpush1.xpose.msra.mxu0 0.0
    %903 = vmatprep.subr.mxu0 0.0
    %904 = vmatpush1.xpose.msra.mxu0 0.0
    %905 = vmatprep.subr.mxu0 0.0
    %906 = vmatpush1.xpose.msra.mxu0 0.0
    %907 = vmatprep.subr.mxu0 0.0
    %908 = vmatpush1.xpose.msra.mxu0 0.0
    %909 = vmatprep.subr.mxu0 0.0
    %910 = vmatpush1.xpose.msra.mxu0 0.0
    %911 = vmatprep.subr.mxu0 0.0
    %912 = vmatpush1.xpose.msra.mxu0 0.0
    %913 = vmatprep.subr.mxu0 0.0
    %914 = vmatpush1.xpose.msra.mxu0 0.0
    %915 = vmatprep.subr.mxu0 0.0
    %916 = vmatpush1.xpose.msra.mxu0 0.0
    %917 = vmatprep.subr.mxu0 0.0
    %918 = vmatpush1.xpose.msra.mxu0 0.0
    %919 = vmatprep.subr.mxu0 0.0
    %920 = vmatpush1.xpose.msra.mxu0 0.0
    %921 = vmatprep.subr.mxu0 0.0
    %922 = vmatpush1.xpose.msra.mxu0 0.0
    %923 = vmatprep.subr.mxu0 0.0
    %924 = vmatpush1.xpose.msra.mxu0 0.0
    %925 = vmatprep.subr.mxu0 0.0
    %926 = vmatpush1.xpose.msra.mxu0 0.0
    %927 = vmatprep.subr.mxu0 0.0
    %928 = vmatpush1.xpose.msra.mxu0 0.0
    %929 = vmatprep.subr.mxu0 0.0
    %930 = vmatpush1.xpose.msra.mxu0 0.0
    %931 = vmatprep.subr.mxu0 0.0
    %932 = vmatpush1.xpose.msra.mxu0 0.0
    %933 = vmatprep.subr.mxu0 0.0
    %934 = vmatpush1.xpose.msra.mxu0 0.0
    %935 = vmatprep.subr.mxu0 0.0
    %936 = vmatpush1.xpose.msra.mxu0 0.0
    %937 = vmatprep.subr.mxu0 0.0
    %938 = vmatpush1.xpose.msra.mxu0 0.0
    %939 = vmatprep.subr.mxu0 0.0
    %940 = vmatpush1.xpose.msra.mxu0 0.0
    %941 = vmatprep.subr.mxu0 0.0
    %942 = vmatpush1.xpose.msra.mxu0 0.0
    %943 = vmatprep.subr.mxu0 0.0
    %944 = vmatpush1.xpose.msra.mxu0 0.0
    %945 = vmatprep.subr.mxu0 0.0
    %946 = vmatpush1.xpose.msra.mxu0 0.0
    %947 = vmatprep.subr.mxu0 0.0
    %948 = vmatpush1.xpose.msra.mxu0 0.0
    %949 = vmatprep.subr.mxu0 0.0
    %950 = vmatpush1.xpose.msra.mxu0 0.0
    %951 = vmatprep.subr.mxu0 0.0
    %952 = vmatpush1.xpose.msra.mxu0 0.0
    %953 = vmatprep.mubr.f32.mxu0 0.0
    %954 = vmatmul.mubr.f32.gmra.mrb[0].mxu0 %v809
    %v955 = vpop.f32.mrb[0].mxu0
    %v956 = vadd.f32 0.0, %v955
    %v957 = vpop.f32.mrb[0].mxu0
    %958 = vmatprep.mubr.f32.mxu0 0.0
    %959 = vmatmul.mubr.f32.gmra.mrb[0].mxu0 %v812
    %v960 = vpop.f32.mrb[0].mxu0
    %v961 = vadd.f32 0.0, %v960
    %v962 = vpop.f32.mrb[0].mxu0
    %963 = vdwg.mxu0
    %v964 = vmul.f32 %v956, 0.25
    %v965 = vmul.f32 %v961, 0.25
    %v966 = vadd.f32 %v964, %v26
    %v967 = vadd.f32 %v965, %v27
    %v968 = vsel %vm42, %v966, -inf
    %969 = vmax.xlane.f32.xlu0 %v968
    %v970 = vpop.xlane.xlu0 %969
    %v971 = vsel %vm42, %v967, -inf
    %972 = vmax.xlane.f32.xlu0 %v971
    %v973 = vpop.xlane.xlu0 %972
    %v974 = vsub.f32 %v966, %v970
    %v975 = vsub.f32 %v967, %v973
    %v976 = vmul.f32 %v974, 1.442695
    %v977 = vpow.pop %v976
    %v978 = vmul.f32 %v975, 1.442695
    %v979 = vpow.pop %v978
    %v980 = vsel %vm42, %v977, 0.0
    %981 = vadd.xlane.f32.xlu0 %v980
    %v982 = vpop.xlane.xlu0 %981
    %v983 = vsel %vm42, %v979, 0.0
    %984 = vadd.xlane.f32.xlu0 %v983
    %v985 = vpop.xlane.xlu0 %984
    %v986 = vrcp.pop %v982
    %v987 = vrcp.pop %v985
    %v988 = vmul.f32 %v982, %v986
    %v989 = vmul.f32 %v985, %v987
    %v990 = vsub.f32 2.0, %v988
    %v991 = vsub.f32 2.0, %v989
    %v992 = vmul.f32 %v986, %v990
    %v993 = vmul.f32 %v987, %v991
    %v994 = vmul.f32 %v977, %v992
    %v995 = vmul.f32 %v979, %v993
    %v997 = vsel %vm42, %v994, 0
    %v1000 = vsel %vm42, %v995, 0
    %1002 = vmatprep.subr.mxu0 0.0
    %1003 = vmatpush1.msra.mxu0 %v881
    %1004 = vmatprep.subr.mxu0 0.0
    %1005 = vmatpush1.msra.mxu0 %v886
    %1006 = vmatprep.subr.mxu0 0.0
    %1007 = vmatpush1.msra.mxu0 0.0
    %1008 = vmatprep.subr.mxu0 0.0
    %1009 = vmatpush1.msra.mxu0 0.0
    %1010 = vmatprep.subr.mxu0 0.0
    %1011 = vmatpush1.msra.mxu0 0.0
    %1012 = vmatprep.subr.mxu0 0.0
    %1013 = vmatpush1.msra.mxu0 0.0
    %1014 = vmatprep.subr.mxu0 0.0
    %1015 = vmatpush1.msra.mxu0 0.0
    %1016 = vmatprep.subr.mxu0 0.0
    %1017 = vmatpush1.msra.mxu0 0.0
    %1018 = vmatprep.subr.mxu0 0.0
    %1019 = vmatpush1.msra.mxu0 0.0
    %1020 = vmatprep.subr.mxu0 0.0
    %1021 = vmatpush1.msra.mxu0 0.0
    %1022 = vmatprep.subr.mxu0 0.0
    %1023 = vmatpush1.msra.mxu0 0.0
    %1024 = vmatprep.subr.mxu0 0.0
    %1025 = vmatpush1.msra.mxu0 0.0
    %1026 = vmatprep.subr.mxu0 0.0
    %1027 = vmatpush1.msra.mxu0 0.0
    %1028 = vmatprep.subr.mxu0 0.0
    %1029 = vmatpush1.msra.mxu0 0.0
    %1030 = vmatprep.subr.mxu0 0.0
    %1031 = vmatpush1.msra.mxu0 0.0
    %1032 = vmatprep.subr.mxu0 0.0
    %1033 = vmatpush1.msra.mxu0 0.0
    %1034 = vmatprep.subr.mxu0 0.0
    %1035 = vmatpush1.msra.mxu0 0.0
    %1036 = vmatprep.subr.mxu0 0.0
    %1037 = vmatpush1.msra.mxu0 0.0
    %1038 = vmatprep.subr.mxu0 0.0
    %1039 = vmatpush1.msra.mxu0 0.0
    %1040 = vmatprep.subr.mxu0 0.0
    %1041 = vmatpush1.msra.mxu0 0.0
    %1042 = vmatprep.subr.mxu0 0.0
    %1043 = vmatpush1.msra.mxu0 0.0
    %1044 = vmatprep.subr.mxu0 0.0
    %1045 = vmatpush1.msra.mxu0 0.0
    %1046 = vmatprep.subr.mxu0 0.0
    %1047 = vmatpush1.msra.mxu0 0.0
    %1048 = vmatprep.subr.mxu0 0.0
    %1049 = vmatpush1.msra.mxu0 0.0
    %1050 = vmatprep.subr.mxu0 0.0
    %1051 = vmatpush1.msra.mxu0 0.0
    %1052 = vmatprep.subr.mxu0 0.0
    %1053 = vmatpush1.msra.mxu0 0.0
    %1054 = vmatprep.subr.mxu0 0.0
    %1055 = vmatpush1.msra.mxu0 0.0
    %1056 = vmatprep.subr.mxu0 0.0
    %1057 = vmatpush1.msra.mxu0 0.0
    %1058 = vmatprep.subr.mxu0 0.0
    %1059 = vmatpush1.msra.mxu0 0.0
    %1060 = vmatprep.subr.mxu0 0.0
    %1061 = vmatpush1.msra.mxu0 0.0
    %1062 = vmatprep.subr.mxu0 0.0
    %1063 = vmatpush1.msra.mxu0 0.0
    %1064 = vmatprep.subr.mxu0 0.0
    %1065 = vmatpush1.msra.mxu0 0.0
    %1066 = vmatprep.mubr.f32.mxu0 0.0
    %1067 = vmatmul.mubr.f32.gmra.mrb[0].mxu0 %v997
    %v1068 = vpop.f32.mrb[0].mxu0
    %v1069 = vadd.f32 0.0, %v1068
    %v1070 = vpop.f32.mrb[0].mxu0
    %1071 = vmatprep.mubr.f32.mxu0 0.0
    %1072 = vmatmul.mubr.f32.gmra.mrb[0].mxu0 %v1000
    %v1073 = vpop.f32.mrb[0].mxu0
    %v1074 = vadd.f32 0.0, %v1073
    %v1075 = vpop.f32.mrb[0].mxu0
    %1076 = vdwg.mxu0
    %v1078 = vlaneseq
    %v1079 = vshrl.u32 %v1078, 7
    %v1080 = vsub.s32 0, %v1079
    %v1081 = vrot.slane %v801, %v1080
    %v1084 = vsel %vm318, %v1069, 0
    %v1087 = vsel %vm318, %v1074, 0
    %1089 = vmatprep.subr.mxu0 0.0
    %1090 = vmatpush1.msra.mxu0 %v796
    %1091 = vmatprep.subr.mxu0 0.0
    %1092 = vmatpush1.msra.mxu0 %v797
    %1093 = vmatprep.subr.mxu0 0.0
    %1094 = vmatpush1.msra.mxu0 %v798
    %1095 = vmatprep.subr.mxu0 0.0
    %1096 = vmatpush1.msra.mxu0 %v799
    %1097 = vmatprep.subr.mxu0 0.0
    %1098 = vmatpush1.msra.mxu0 0.0
    %1099 = vmatprep.subr.mxu0 0.0
    %1100 = vmatpush1.msra.mxu0 0.0
    %1101 = vmatprep.subr.mxu0 0.0
    %1102 = vmatpush1.msra.mxu0 0.0
    %1103 = vmatprep.subr.mxu0 0.0
    %1104 = vmatpush1.msra.mxu0 0.0
    %1105 = vmatprep.subr.mxu0 0.0
    %1106 = vmatpush1.msra.mxu0 0.0
    %1107 = vmatprep.subr.mxu0 0.0
    %1108 = vmatpush1.msra.mxu0 0.0
    %1109 = vmatprep.subr.mxu0 0.0
    %1110 = vmatpush1.msra.mxu0 0.0
    %1111 = vmatprep.subr.mxu0 0.0
    %1112 = vmatpush1.msra.mxu0 0.0
    %1113 = vmatprep.subr.mxu0 0.0
    %1114 = vmatpush1.msra.mxu0 0.0
    %1115 = vmatprep.subr.mxu0 0.0
    %1116 = vmatpush1.msra.mxu0 0.0
    %1117 = vmatprep.subr.mxu0 0.0
    %1118 = vmatpush1.msra.mxu0 0.0
    %1119 = vmatprep.subr.mxu0 0.0
    %1120 = vmatpush1.msra.mxu0 0.0
    %1121 = vmatprep.subr.mxu0 0.0
    %1122 = vmatpush1.msra.mxu0 0.0
    %1123 = vmatprep.subr.mxu0 0.0
    %1124 = vmatpush1.msra.mxu0 0.0
    %1125 = vmatprep.subr.mxu0 0.0
    %1126 = vmatpush1.msra.mxu0 0.0
    %1127 = vmatprep.subr.mxu0 0.0
    %1128 = vmatpush1.msra.mxu0 0.0
    %1129 = vmatprep.subr.mxu0 0.0
    %1130 = vmatpush1.msra.mxu0 0.0
    %1131 = vmatprep.subr.mxu0 0.0
    %1132 = vmatpush1.msra.mxu0 0.0
    %1133 = vmatprep.subr.mxu0 0.0
    %1134 = vmatpush1.msra.mxu0 0.0
    %1135 = vmatprep.subr.mxu0 0.0
    %1136 = vmatpush1.msra.mxu0 0.0
    %1137 = vmatprep.subr.mxu0 0.0
    %1138 = vmatpush1.msra.mxu0 0.0
    %1139 = vmatprep.subr.mxu0 0.0
    %1140 = vmatpush1.msra.mxu0 0.0
    %1141 = vmatprep.subr.mxu0 0.0
    %1142 = vmatpush1.msra.mxu0 0.0
    %1143 = vmatprep.subr.mxu0 0.0
    %1144 = vmatpush1.msra.mxu0 0.0
    %1145 = vmatprep.subr.mxu0 0.0
    %1146 = vmatpush1.msra.mxu0 0.0
    %1147 = vmatprep.subr.mxu0 0.0
    %1148 = vmatpush1.msra.mxu0 0.0
    %1149 = vmatprep.subr.mxu0 0.0
    %1150 = vmatpush1.msra.mxu0 0.0
    %1151 = vmatprep.subr.mxu0 0.0
    %1152 = vmatpush1.msra.mxu0 0.0
    %1153 = vmatprep.mubr.f32.mxu0 0.0
    %1154 = vmatmul.mubr.f32.gmra.mrb[0].mxu0 %v1084
    %v1155 = vpop.f32.mrb[0].mxu0
    %v1156 = vadd.f32 %v1081, %v1155
    %v1157 = vpop.f32.mrb[0].mxu0
    %1158 = vmatprep.mubr.f32.mxu0 0.0
    %1159 = vmatmul.mubr.f32.gmra.mrb[0].mxu0 %v1087
    %v1160 = vpop.f32.mrb[0].mxu0
    %v1161 = vadd.f32 %v1081, %v1160
    %v1162 = vpop.f32.mrb[0].mxu0
    %1163 = vdwg.mxu0
    %vm1164 = vcmp.ge.f32.partialorder %v1156, 0.0
    %vm1165 = vcmp.ge.f32.partialorder %v1161, 0.0
    %v1166 = vmul.f32 %v1156, 0.2
    %v1167 = vmul.f32 %v1161, 0.2
    %v1168 = vsel %vm1164, %v1156, %v1166
    %v1169 = vsel %vm1165, %v1161, %v1167
    %v1170 = vadd.f32 %v1168, %v788
    %v1171 = vadd.f32 %v1169, %v789
    %1172 = vst.msk [vmem:[#allocation2] sm:$0xff] %vm42, %v1170
    %1173 = vst.msk [vmem:[#allocation2 + $0x8] sm:$0xff] %vm42, %v1171
    // Predicated region
    $region26: #{tpu_custom_call.1} parent=1 // pred_check
      _
    $region27: #{tpu_custom_call.1} parent=1 // pred_check_branch
      %1175 = sbr.rel (0) target = $region29
    $region28: #{tpu_custom_call.1} parent=1 // pred_region
      %s1177 = ssub.s32 256, 256
      %1178 = vsyncadd [#allocation3], %s1177
      %s1179 = sshll.u32 [#allocation2], 4
      %s1180 = int_to_ptr.vmem [resolvable:$true] %s1179
      %1185 = dma.vmem_to_hbm [thread:$0]  %s1180, 256, %s6, [#allocation3], 128, 128, 8
    $region29: #{tpu_custom_call.1} parent=1 // pred_fallthru
      _
    // Predicated region
    $region30: #{tpu_custom_call.1} parent=1 // pred_check
      _
    $region31: #{tpu_custom_call.1} parent=1 // pred_check_branch
      %1187 = sbr.rel (0) target = $region33
    $region32: #{tpu_custom_call.1} parent=1 // pred_region
      %1188 = dma.done [#allocation3], 256
    $region33: #{tpu_custom_call.1} parent=1 // pred_fallthru
      _
    %1189 = vsyncpa [#allocation3], 1

</llo_original>
